<compile_context>
chip_gen: v5e
topology: v5e:2x2
jax: 0.10.0
libtpu: 0.0.40
codegen_flags: <defaults>
</compile_context>

<pallas_src>
import jax
import jax.numpy as jnp
from jax import lax
from jax.experimental import pallas as pl
from jax.experimental.pallas import tpu as pltpu

# ----------------------- model hyper-params (small) -----------------------
INPUT_DIM = 32
LAYER_SIZES = [64, 48]
NUM_CLASSES = 21
BATCH = 16
MAX_TB = 2048        # max rows per grid step
EPS = 1e-5           # nn.LayerNorm default
NEG_SLOPE = 0.01     # nn.LeakyReLU default


# ------------------------------- kernel ------------------------------------
def _layernorm(x, d):
    """Pure normalization (affine folded into the following Linear).
    Fused statistics: one pass computes sum and sum-of-squares; biased
    variance = E[x^2] - E[x]^2 (PyTorch semantics), clamped at 0."""
    inv_d = 1.0 / d
    s = jnp.sum(x, axis=-1, keepdims=True)
    s2 = jnp.sum(x * x, axis=-1, keepdims=True)
    mu = s * inv_d
    var = jnp.maximum(s2 * inv_d - mu * mu, 0.0)
    return (x - mu) * lax.rsqrt(var + EPS)


def _leaky_relu(x):
    # slope < 1  =>  max(x, slope*x) == LeakyReLU(x); 2 VPU ops instead of 3.
    return jnp.maximum(x, NEG_SLOPE * x)


def ft_kernel(x_ref,
              w1_ref, b1_ref,
              w2_ref, b2_ref,
              wc_ref, bc_ref,
              out_ref):
    x = x_ref[...].astype(jnp.float32)

    # norm_in (its gamma/beta are folded into w1/b1)
    x = _layernorm(x, INPUT_DIM)

    # block 1: Linear -> LeakyReLU -> LayerNorm (LN1 affine folded into w2/b2)
    h = jnp.dot(x, w1_ref[...], preferred_element_type=jnp.float32) + b1_ref[...]
    h = _layernorm(_leaky_relu(h), LAYER_SIZES[0])

    # block 2: Linear -> LeakyReLU -> LayerNorm (LN2 affine folded into wc/bc)
    h = jnp.dot(h, w2_ref[...], preferred_element_type=jnp.float32) + b2_ref[...]
    h = _layernorm(_leaky_relu(h), LAYER_SIZES[1])

    # classifier -- stored directly at true width (no padded HBM output)
    out = jnp.dot(h, wc_ref[...], preferred_element_type=jnp.float32) + bc_ref[...]
    out_ref[...] = out.astype(out_ref.dtype)


# ------------------------------ wrapper -------------------------------------
def _choose_tiling(B):
    """Pick (tile_rows, padded_batch).  At least 2 grid steps when B >= 16 so
    the parallel axis spans both TensorCores on v7x; tile capped at MAX_TB."""
    if B < 16:
        return B, B                       # single step; block == full array dim
    tb = min(MAX_TB, max(8, ((B // 2) // 8) * 8))
    Bp = pl.cdiv(B, tb) * tb              # pad rows so the grid divides evenly
    return tb, Bp


def prepare_params(params):
    """One-time preprocessing: fold each LayerNorm's affine (gamma, beta) into
    the immediately-following Linear:
        (y*gamma + beta) @ W + b  ==  y @ (gamma^T * W) + (beta @ W + b)
    Call once; do NOT call per forward pass."""
    def fold(gamma, beta, w, b):
        w_f = gamma.reshape(-1, 1) * w
        b_f = beta @ w + b
        return w_f, b_f

    w1, b1 = fold(params["g_in"], params["b_in"], params["w1"], params["b1"])
    w2, b2 = fold(params["g1"], params["bb1"], params["w2"], params["b2"])
    wc, bc = fold(params["g2"], params["bb2"], params["wc"], params["bc"])
    return dict(w1=w1, b1=b1, w2=w2, b2=b2, wc=wc, bc=bc)


def ft_model_pallas(x, prep):
    """x: (B, INPUT_DIM) f32.  prep: output of prepare_params()."""
    B, d_in = x.shape
    assert d_in == INPUT_DIM

    tb, Bp = _choose_tiling(B)
    if Bp != B:
        x = jnp.concatenate(
            [x, jnp.zeros((Bp - B, INPUT_DIM), x.dtype)], axis=0)
    grid = (Bp // tb,)

    ordered = [prep["w1"], prep["b1"],
               prep["w2"], prep["b2"],
               prep["wc"], prep["bc"]]

    def full_spec(a):
        # whole array VMEM-resident; block index constant across the grid
        return pl.BlockSpec(a.shape, lambda i: (0,) * a.ndim)

    in_specs = [pl.BlockSpec((tb, INPUT_DIM), lambda i: (i, 0))]
    in_specs += [full_spec(a) for a in ordered]
    out_spec = pl.BlockSpec((tb, NUM_CLASSES), lambda i: (i, 0))

    out = pl.pallas_call(
        ft_kernel,
        out_shape=jax.ShapeDtypeStruct((Bp, NUM_CLASSES), jnp.float32),
        grid_spec=pltpu.PrefetchScalarGridSpec(
            num_scalar_prefetch=0,
            grid=grid,
            in_specs=in_specs,
            out_specs=out_spec,
        ),
        compiler_params=pltpu.CompilerParams(
            dimension_semantics=("parallel",),
            # footprint at tb=2048 is ~1-2 MiB; stay well under v7x's
            # 32 MiB default scoped / 64 MiB physical VMEM
            vmem_limit_bytes=32 * 1024 * 1024,
        ),
    )(x, *ordered)

    return out[:B] if Bp != B else out


# --------------------------- params & reference ------------------------------
def init_params(key):
    """Synthetic parameters matching FTModel's shapes.  PyTorch nn.Linear
    stores W as (out, in); here pre-transposed to (in, out).  LayerNorm
    affine params are perturbed from the ones/zeros init so the fold path is
    actually exercised (represents a trained model)."""
    ks = jax.random.split(key, 6)
    d0, d1, d2 = INPUT_DIM, LAYER_SIZES[0], LAYER_SIZES[1]

    def lin(k, din, dout):
        kw, kb = jax.random.split(k)
        bound = 1.0 / jnp.sqrt(din)
        w = jax.random.uniform(kw, (din, dout), jnp.float32, -bound, bound)
        b = jax.random.uniform(kb, (1, dout), jnp.float32, -bound, bound)
        return w, b

    def ln(k, d):
        kg, kb = jax.random.split(k)
        g = 1.0 + 0.1 * jax.random.normal(kg, (1, d), jnp.float32)
        b = 0.1 * jax.random.normal(kb, (1, d), jnp.float32)
        return g, b

    w1, b1 = lin(ks[0], d0, d1)
    w2, b2 = lin(ks[1], d1, d2)
    wc, bc = lin(ks[2], d2, NUM_CLASSES)
    g_in, b_in = ln(ks[3], d0)
    g1, bb1 = ln(ks[4], d1)
    g2, bb2 = ln(ks[5], d2)

    return dict(
        g_in=g_in, b_in=b_in,
        w1=w1, b1=b1, g1=g1, bb1=bb1,
        w2=w2, b2=b2, g2=g2, bb2=bb2,
        wc=wc, bc=bc,
    )


def _layernorm_ref(x, gamma, beta):
    # Two-pass PyTorch-style reference (biased variance), with affine.
    mu = jnp.mean(x, axis=-1, keepdims=True)
    var = jnp.mean((x - mu) ** 2, axis=-1, keepdims=True)
    return (x - mu) * lax.rsqrt(var + EPS) * gamma + beta


def ft_model_ref(x, p):
    """Pure-JAX reference of FTModel.forward (unfolded params)."""
    x = _layernorm_ref(x, p["g_in"], p["b_in"])
    x = _layernorm_ref(_leaky_relu(x @ p["w1"] + p["b1"]), p["g1"], p["bb1"])
    x = _layernorm_ref(_leaky_relu(x @ p["w2"] + p["b2"]), p["g2"], p["bb2"])
    return x @ p["wc"] + p["bc"]


if __name__ == "__main__":
    key = jax.random.PRNGKey(0)
    kx, kp = jax.random.split(key)
    x = jax.random.normal(kx, (BATCH, INPUT_DIM), jnp.float32)
    params = init_params(kp)
    prep = prepare_params(params)          # one-time preprocessing

    out = ft_model_pallas(x, prep)
    out = jax.block_until_ready(out)

    ref = ft_model_ref(x, params)
    assert out.shape == (BATCH, NUM_CLASSES)
    assert jnp.allclose(out, ref, atol=1e-4, rtol=1e-4), "mismatch vs JAX reference"

    print("KERNEL_OK")
</pallas_src>

<mosaic_0001>
module attributes {stable_mosaic.version = 11 : i64} {
  func.func @ft_kernel(%arg0: i32, %arg1: memref<8x32xf32, #tpu.memory_space<vmem>>, %arg2: memref<32x64xf32, #tpu.memory_space<vmem>>, %arg3: memref<1x64xf32, #tpu.memory_space<vmem>>, %arg4: memref<64x48xf32, #tpu.memory_space<vmem>>, %arg5: memref<1x48xf32, #tpu.memory_space<vmem>>, %arg6: memref<48x21xf32, #tpu.memory_space<vmem>>, %arg7: memref<1x21xf32, #tpu.memory_space<vmem>>, %arg8: memref<8x21xf32, #tpu.memory_space<vmem>>) attributes {dimension_semantics = [#tpu.dimension_semantics<parallel>], iteration_bounds = array<i64: 2>, scalar_prefetch = 0 : i64, scratch_operands = 0 : i64, tpu.core_type = #tpu.core_type<tc>, window_params = [{transform_indices = @transform_0, window_bounds = array<i64: 8, 32>}, {pipeline_mode = #tpu.pipeline_mode<synchronous>, transform_indices = @transform_1, window_bounds = array<i64: 32, 64>}, {pipeline_mode = #tpu.pipeline_mode<synchronous>, transform_indices = @transform_2, window_bounds = array<i64: 1, 64>}, {pipeline_mode = #tpu.pipeline_mode<synchronous>, transform_indices = @transform_3, window_bounds = array<i64: 64, 48>}, {pipeline_mode = #tpu.pipeline_mode<synchronous>, transform_indices = @transform_4, window_bounds = array<i64: 1, 48>}, {pipeline_mode = #tpu.pipeline_mode<synchronous>, transform_indices = @transform_5, window_bounds = array<i64: 48, 21>}, {pipeline_mode = #tpu.pipeline_mode<synchronous>, transform_indices = @transform_6, window_bounds = array<i64: 1, 21>}, {transform_indices = @transform_7, window_bounds = array<i64: 8, 21>}]} {
    %c0 = arith.constant 0 : index
    %c0_0 = arith.constant 0 : index
    %0 = vector.load %arg1[%c0, %c0_0] : memref<8x32xf32, #tpu.memory_space<vmem>>, vector<8x32xf32>
    %cst = arith.constant dense<0.000000e+00> : vector<8xf32>
    %1 = vector.multi_reduction <add>, %0, %cst [1] : vector<8x32xf32> to vector<8xf32>
    %2 = vector.shape_cast %1 : vector<8xf32> to vector<8x1xf32>
    %3 = arith.mulf %0, %0 : vector<8x32xf32>
    %cst_1 = arith.constant dense<0.000000e+00> : vector<8xf32>
    %4 = vector.multi_reduction <add>, %3, %cst_1 [1] : vector<8x32xf32> to vector<8xf32>
    %5 = vector.shape_cast %4 : vector<8xf32> to vector<8x1xf32>
    %cst_2 = arith.constant 3.125000e-02 : f32
    %6 = vector.broadcast %cst_2 : f32 to vector<8x1xf32>
    %7 = arith.mulf %2, %6 : vector<8x1xf32>
    %cst_3 = arith.constant 3.125000e-02 : f32
    %8 = vector.broadcast %cst_3 : f32 to vector<8x1xf32>
    %9 = arith.mulf %5, %8 : vector<8x1xf32>
    %10 = arith.mulf %7, %7 : vector<8x1xf32>
    %11 = arith.subf %9, %10 : vector<8x1xf32>
    %cst_4 = arith.constant 0.000000e+00 : f32
    %12 = vector.broadcast %cst_4 : f32 to vector<8x1xf32>
    %13 = arith.maximumf %11, %12 : vector<8x1xf32>
    %14 = vector.broadcast %7 : vector<8x1xf32> to vector<8x32xf32>
    %15 = arith.subf %0, %14 : vector<8x32xf32>
    %cst_5 = arith.constant 9.99999974E-6 : f32
    %16 = vector.broadcast %cst_5 : f32 to vector<8x1xf32>
    %17 = arith.addf %13, %16 : vector<8x1xf32>
    %18 = math.rsqrt %17 : vector<8x1xf32>
    %19 = vector.broadcast %18 : vector<8x1xf32> to vector<8x32xf32>
    %20 = arith.mulf %15, %19 : vector<8x32xf32>
    %c0_6 = arith.constant 0 : index
    %c0_7 = arith.constant 0 : index
    %21 = vector.load %arg2[%c0_6, %c0_7] : memref<32x64xf32, #tpu.memory_space<vmem>>, vector<32x64xf32>
    %cst_8 = arith.constant dense<0.000000e+00> : vector<8x64xf32>
    %22 = tpu.matmul %20, %21, %cst_8 {dimension_numbers = #tpu.dot_dimension_numbers<[1], [0], [0], [1], [0, 0, 1, 1], [], []>} : vector<8x32xf32>, vector<32x64xf32>, vector<8x64xf32> -> vector<8x64xf32>
    %c0_9 = arith.constant 0 : index
    %c0_10 = arith.constant 0 : index
    %23 = vector.load %arg3[%c0_9, %c0_10] : memref<1x64xf32, #tpu.memory_space<vmem>>, vector<1x64xf32>
    %24 = vector.broadcast %23 : vector<1x64xf32> to vector<8x64xf32>
    %25 = arith.addf %22, %24 : vector<8x64xf32>
    %cst_11 = arith.constant 0.00999999977 : f32
    %26 = vector.broadcast %cst_11 : f32 to vector<8x64xf32>
    %27 = arith.mulf %26, %25 : vector<8x64xf32>
    %28 = arith.maximumf %25, %27 : vector<8x64xf32>
    %cst_12 = arith.constant dense<0.000000e+00> : vector<8xf32>
    %29 = vector.multi_reduction <add>, %28, %cst_12 [1] : vector<8x64xf32> to vector<8xf32>
    %30 = vector.shape_cast %29 : vector<8xf32> to vector<8x1xf32>
    %31 = arith.mulf %28, %28 : vector<8x64xf32>
    %cst_13 = arith.constant dense<0.000000e+00> : vector<8xf32>
    %32 = vector.multi_reduction <add>, %31, %cst_13 [1] : vector<8x64xf32> to vector<8xf32>
    %33 = vector.shape_cast %32 : vector<8xf32> to vector<8x1xf32>
    %cst_14 = arith.constant 1.562500e-02 : f32
    %34 = vector.broadcast %cst_14 : f32 to vector<8x1xf32>
    %35 = arith.mulf %30, %34 : vector<8x1xf32>
    %cst_15 = arith.constant 1.562500e-02 : f32
    %36 = vector.broadcast %cst_15 : f32 to vector<8x1xf32>
    %37 = arith.mulf %33, %36 : vector<8x1xf32>
    %38 = arith.mulf %35, %35 : vector<8x1xf32>
    %39 = arith.subf %37, %38 : vector<8x1xf32>
    %cst_16 = arith.constant 0.000000e+00 : f32
    %40 = vector.broadcast %cst_16 : f32 to vector<8x1xf32>
    %41 = arith.maximumf %39, %40 : vector<8x1xf32>
    %42 = vector.broadcast %35 : vector<8x1xf32> to vector<8x64xf32>
    %43 = arith.subf %28, %42 : vector<8x64xf32>
    %cst_17 = arith.constant 9.99999974E-6 : f32
    %44 = vector.broadcast %cst_17 : f32 to vector<8x1xf32>
    %45 = arith.addf %41, %44 : vector<8x1xf32>
    %46 = math.rsqrt %45 : vector<8x1xf32>
    %47 = vector.broadcast %46 : vector<8x1xf32> to vector<8x64xf32>
    %48 = arith.mulf %43, %47 : vector<8x64xf32>
    %c0_18 = arith.constant 0 : index
    %c0_19 = arith.constant 0 : index
    %49 = vector.load %arg4[%c0_18, %c0_19] : memref<64x48xf32, #tpu.memory_space<vmem>>, vector<64x48xf32>
    %cst_20 = arith.constant dense<0.000000e+00> : vector<8x48xf32>
    %50 = tpu.matmul %48, %49, %cst_20 {dimension_numbers = #tpu.dot_dimension_numbers<[1], [0], [0], [1], [0, 0, 1, 1], [], []>} : vector<8x64xf32>, vector<64x48xf32>, vector<8x48xf32> -> vector<8x48xf32>
    %c0_21 = arith.constant 0 : index
    %c0_22 = arith.constant 0 : index
    %51 = vector.load %arg5[%c0_21, %c0_22] : memref<1x48xf32, #tpu.memory_space<vmem>>, vector<1x48xf32>
    %52 = vector.broadcast %51 : vector<1x48xf32> to vector<8x48xf32>
    %53 = arith.addf %50, %52 : vector<8x48xf32>
    %cst_23 = arith.constant 0.00999999977 : f32
    %54 = vector.broadcast %cst_23 : f32 to vector<8x48xf32>
    %55 = arith.mulf %54, %53 : vector<8x48xf32>
    %56 = arith.maximumf %53, %55 : vector<8x48xf32>
    %cst_24 = arith.constant dense<0.000000e+00> : vector<8xf32>
    %57 = vector.multi_reduction <add>, %56, %cst_24 [1] : vector<8x48xf32> to vector<8xf32>
    %58 = vector.shape_cast %57 : vector<8xf32> to vector<8x1xf32>
    %59 = arith.mulf %56, %56 : vector<8x48xf32>
    %cst_25 = arith.constant dense<0.000000e+00> : vector<8xf32>
    %60 = vector.multi_reduction <add>, %59, %cst_25 [1] : vector<8x48xf32> to vector<8xf32>
    %61 = vector.shape_cast %60 : vector<8xf32> to vector<8x1xf32>
    %cst_26 = arith.constant 0.020833334 : f32
    %62 = vector.broadcast %cst_26 : f32 to vector<8x1xf32>
    %63 = arith.mulf %58, %62 : vector<8x1xf32>
    %cst_27 = arith.constant 0.020833334 : f32
    %64 = vector.broadcast %cst_27 : f32 to vector<8x1xf32>
    %65 = arith.mulf %61, %64 : vector<8x1xf32>
    %66 = arith.mulf %63, %63 : vector<8x1xf32>
    %67 = arith.subf %65, %66 : vector<8x1xf32>
    %cst_28 = arith.constant 0.000000e+00 : f32
    %68 = vector.broadcast %cst_28 : f32 to vector<8x1xf32>
    %69 = arith.maximumf %67, %68 : vector<8x1xf32>
    %70 = vector.broadcast %63 : vector<8x1xf32> to vector<8x48xf32>
    %71 = arith.subf %56, %70 : vector<8x48xf32>
    %cst_29 = arith.constant 9.99999974E-6 : f32
    %72 = vector.broadcast %cst_29 : f32 to vector<8x1xf32>
    %73 = arith.addf %69, %72 : vector<8x1xf32>
    %74 = math.rsqrt %73 : vector<8x1xf32>
    %75 = vector.broadcast %74 : vector<8x1xf32> to vector<8x48xf32>
    %76 = arith.mulf %71, %75 : vector<8x48xf32>
    %c0_30 = arith.constant 0 : index
    %c0_31 = arith.constant 0 : index
    %77 = vector.load %arg6[%c0_30, %c0_31] : memref<48x21xf32, #tpu.memory_space<vmem>>, vector<48x21xf32>
    %cst_32 = arith.constant dense<0.000000e+00> : vector<8x21xf32>
    %78 = tpu.matmul %76, %77, %cst_32 {dimension_numbers = #tpu.dot_dimension_numbers<[1], [0], [0], [1], [0, 0, 1, 1], [], []>} : vector<8x48xf32>, vector<48x21xf32>, vector<8x21xf32> -> vector<8x21xf32>
    %c0_33 = arith.constant 0 : index
    %c0_34 = arith.constant 0 : index
    %79 = vector.load %arg7[%c0_33, %c0_34] : memref<1x21xf32, #tpu.memory_space<vmem>>, vector<1x21xf32>
    %80 = vector.broadcast %79 : vector<1x21xf32> to vector<8x21xf32>
    %81 = arith.addf %78, %80 : vector<8x21xf32>
    %c0_35 = arith.constant 0 : index
    %c0_36 = arith.constant 0 : index
    %82 = vector.load %arg8[%c0_35, %c0_36] : memref<8x21xf32, #tpu.memory_space<vmem>>, vector<8x21xf32>
    tpu.vector_store %arg8[%c0_35, %c0_36], %81 {strides = array<i32>} : memref<8x21xf32, #tpu.memory_space<vmem>>, vector<8x21xf32>,
    return
  }
  func.func @transform_0(%arg0: i32) -> (i32, i32) {
    %c0_i32 = arith.constant 0 : i32
    %c0_i32_0 = arith.constant 0 : i32
    return %arg0, %c0_i32 : i32, i32
  }
  func.func @transform_1(%arg0: i32) -> (i32, i32) {
    %c0_i32 = arith.constant 0 : i32
    %c0_i32_0 = arith.constant 0 : i32
    %c0_i32_1 = arith.constant 0 : i32
    return %c0_i32, %c0_i32_0 : i32, i32
  }
  func.func @transform_2(%arg0: i32) -> (i32, i32) {
    %c0_i32 = arith.constant 0 : i32
    %c0_i32_0 = arith.constant 0 : i32
    %c0_i32_1 = arith.constant 0 : i32
    return %c0_i32, %c0_i32_0 : i32, i32
  }
  func.func @transform_3(%arg0: i32) -> (i32, i32) {
    %c0_i32 = arith.constant 0 : i32
    %c0_i32_0 = arith.constant 0 : i32
    %c0_i32_1 = arith.constant 0 : i32
    return %c0_i32, %c0_i32_0 : i32, i32
  }
  func.func @transform_4(%arg0: i32) -> (i32, i32) {
    %c0_i32 = arith.constant 0 : i32
    %c0_i32_0 = arith.constant 0 : i32
    %c0_i32_1 = arith.constant 0 : i32
    return %c0_i32, %c0_i32_0 : i32, i32
  }
  func.func @transform_5(%arg0: i32) -> (i32, i32) {
    %c0_i32 = arith.constant 0 : i32
    %c0_i32_0 = arith.constant 0 : i32
    %c0_i32_1 = arith.constant 0 : i32
    return %c0_i32, %c0_i32_0 : i32, i32
  }
  func.func @transform_6(%arg0: i32) -> (i32, i32) {
    %c0_i32 = arith.constant 0 : i32
    %c0_i32_0 = arith.constant 0 : i32
    %c0_i32_1 = arith.constant 0 : i32
    return %c0_i32, %c0_i32_0 : i32, i32
  }
  func.func @transform_7(%arg0: i32) -> (i32, i32) {
    %c0_i32 = arith.constant 0 : i32
    %c0_i32_0 = arith.constant 0 : i32
    return %arg0, %c0_i32 : i32, i32
  }
}

</mosaic_0001>

<llo_original>
// kernel: tpu_custom_call.1
$region0: #{tpu_custom_call.1}
  #allocation0 [shape = 'u32[]', space=smem, size = 0x4, offset = 0x4, fixed_abs, tag = 'smem constant byte address 0x4 - core index']
  #allocation1 [shape = 'u32[72,128]{1,0:T(1,128)}', space=vmem, size = 0x9000, scoped, tag = 'internal scratch']
  %s0 = inlined_call_operand.vmem [shape: f32[16,32], index: 0, kind: input, shape index: {}]
  %s1 = inlined_call_operand.vmem [shape: f32[32,64], index: 1, kind: input, shape index: {}]
  %s2 = inlined_call_operand.vmem [shape: f32[1,64], index: 2, kind: input, shape index: {}]
  %s3 = inlined_call_operand.vmem [shape: f32[64,48], index: 3, kind: input, shape index: {}]
  %s4 = inlined_call_operand.vmem [shape: f32[1,48], index: 4, kind: input, shape index: {}]
  %s5 = inlined_call_operand.vmem [shape: f32[48,21], index: 5, kind: input, shape index: {}]
  %s6 = inlined_call_operand.vmem [shape: f32[1,21], index: 6, kind: input, shape index: {}]
  %s7 = inlined_call_operand.hbm [shape: f32[16,21], index: 7, kind: output, shape index: {}]
  %s8 = sld [smem:[#allocation0]]
  $region61: #{tpu_custom_call.1} parent=0
    _
  %s10 = ssub.s32 1, %s8
  %s11 = scalar_select 0, %s10, %s8
  $region1: #{tpu_custom_call.1} parent=0
    #allocation2 [shape = 'u8[8192]{0}', space=vmem, size = 0x2000, scoped, tag = 'output window, operand 0']
    #allocation3 [shape = 's32[2]{0}', space=sflag, size = 0x8, scoped, tag = 'scoped memory for tpu_custom_call.1']
    %12 = vsyncpa [#allocation3], 0
    %s13 = scalar_lea.sflag [#allocation3], 1
    %14 = vsyncpa %s13, 0
    loop: start=0, step=1, limit=4
    $region2: #{tpu_custom_call.1} parent=1 // loop_pre_header
      _
    $region3: #{tpu_custom_call.1} parent=1 // loop_header
      %s16 = sphi 0, %s20
      %p17 = scmp.ge.s32.totalorder %s16, 4
      %s26 = sphi 0, %s28
      %s29 = sphi 0, %s26
      %s30 = sphi 0, %s29
      %s46 = sphi 0, %s30
      %s50 = sphi 0, %s50
      %s52 = sphi 0, %s50
      %s53 = sphi 0, %s52
      %s67 = sphi 0, %s53
      %s71 = sphi 0, %s71
      %s73 = sphi 0, %s71
      %s74 = sphi 0, %s73
      %s88 = sphi 0, %s74
      %s92 = sphi 0, %s92
      %s94 = sphi 0, %s92
      %s95 = sphi 0, %s94
      %s109 = sphi 0, %s95
      %s113 = sphi 0, %s113
      %s115 = sphi 0, %s113
      %s116 = sphi 0, %s115
      %s130 = sphi 0, %s116
      %s134 = sphi 0, %s134
      %s136 = sphi 0, %s134
      %s137 = sphi 0, %s136
      %s151 = sphi 0, %s137
      %s155 = sphi 0, %s155
      %s157 = sphi 0, %s155
      %s158 = sphi 0, %s157
      %s172 = sphi 0, %s158
      %s178 = sphi 0, %s180
      %s181 = sphi 0, %s178
      %s182 = sphi 0, %s181
      %s198 = sphi 0, %s182
    $region4: #{tpu_custom_call.1} parent=1 // loop_header_branch
      %19 = sbr.rel (%p17) target = $region8
    $region5: #{tpu_custom_call.1} parent=1 // loop_body
      %s21 = ssub.s32 %s16, 1
      %s22 = ssub.s32 %s16, 2
      %s23 = sadd.s32 %s16, 1
      %s24 = ssub.s32 %s16, %s23
      %p25 = scmp.eq.s32.totalorder %s24, 0
      %s27 = sadd.s32 %s26, 1
      %s28 = scalar_select %p25, %s26, %s27
      %p31 = pneg %p25
      %p32 = scmp.eq.s32.totalorder %s16, 1
      %p33 = por %p31, %p32
      %p34 = scmp.ne.s32.totalorder %s26, %s29
      %p35 = scmp.eq.s32.totalorder %s16, 0
      %p36 = por %p34, %p35
      %p37 = scmp.ne.s32.totalorder %s26, %s29
      %p38 = scmp.eq.s32.totalorder %s21, 1
      %p39 = por %p37, %p38
      %p40 = scmp.ne.s32.totalorder %s29, %s30
      %p41 = scmp.eq.s32.totalorder %s21, 0
      %p42 = por %p40, %p41
      %p43 = scmp.ne.s32.totalorder %s29, %s30
      %p44 = scmp.eq.s32.totalorder %s22, 1
      %p45 = por %p43, %p44
      %p47 = scmp.ne.s32.totalorder %s30, %s46
      %p48 = scmp.eq.s32.totalorder %s22, 0
      %p49 = por %p47, %p48
      %s51 = sadd.s32 %s50, 1
      %p54 = scmp.eq.s32.totalorder %s16, 1
      %p55 = scmp.ne.s32.totalorder %s50, %s52
      %p56 = scmp.eq.s32.totalorder %s16, 0
      %p57 = por %p55, %p56
      %p58 = scmp.ne.s32.totalorder %s50, %s52
      %p59 = scmp.eq.s32.totalorder %s21, 1
      %p60 = por %p58, %p59
      %p61 = scmp.ne.s32.totalorder %s52, %s53
      %p62 = scmp.eq.s32.totalorder %s21, 0
      %p63 = por %p61, %p62
      %p64 = scmp.ne.s32.totalorder %s52, %s53
      %p65 = scmp.eq.s32.totalorder %s22, 1
      %p66 = por %p64, %p65
      %p68 = scmp.ne.s32.totalorder %s53, %s67
      %p69 = scmp.eq.s32.totalorder %s22, 0
      %p70 = por %p68, %p69
      %s72 = sadd.s32 %s71, 1
      %p75 = scmp.eq.s32.totalorder %s16, 1
      %p76 = scmp.ne.s32.totalorder %s71, %s73
      %p77 = scmp.eq.s32.totalorder %s16, 0
      %p78 = por %p76, %p77
      %p79 = scmp.ne.s32.totalorder %s71, %s73
      %p80 = scmp.eq.s32.totalorder %s21, 1
      %p81 = por %p79, %p80
      %p82 = scmp.ne.s32.totalorder %s73, %s74
      %p83 = scmp.eq.s32.totalorder %s21, 0
      %p84 = por %p82, %p83
      %p85 = scmp.ne.s32.totalorder %s73, %s74
      %p86 = scmp.eq.s32.totalorder %s22, 1
      %p87 = por %p85, %p86
      %p89 = scmp.ne.s32.totalorder %s74, %s88
      %p90 = scmp.eq.s32.totalorder %s22, 0
      %p91 = por %p89, %p90
      %s93 = sadd.s32 %s92, 1
      %p96 = scmp.eq.s32.totalorder %s16, 1
      %p97 = scmp.ne.s32.totalorder %s92, %s94
      %p98 = scmp.eq.s32.totalorder %s16, 0
      %p99 = por %p97, %p98
      %p100 = scmp.ne.s32.totalorder %s92, %s94
      %p101 = scmp.eq.s32.totalorder %s21, 1
      %p102 = por %p100, %p101
      %p103 = scmp.ne.s32.totalorder %s94, %s95
      %p104 = scmp.eq.s32.totalorder %s21, 0
      %p105 = por %p103, %p104
      %p106 = scmp.ne.s32.totalorder %s94, %s95
      %p107 = scmp.eq.s32.totalorder %s22, 1
      %p108 = por %p106, %p107
      %p110 = scmp.ne.s32.totalorder %s95, %s109
      %p111 = scmp.eq.s32.totalorder %s22, 0
      %p112 = por %p110, %p111
      %s114 = sadd.s32 %s113, 1
      %p117 = scmp.eq.s32.totalorder %s16, 1
      %p118 = scmp.ne.s32.totalorder %s113, %s115
      %p119 = scmp.eq.s32.totalorder %s16, 0
      %p120 = por %p118, %p119
      %p121 = scmp.ne.s32.totalorder %s113, %s115
      %p122 = scmp.eq.s32.totalorder %s21, 1
      %p123 = por %p121, %p122
      %p124 = scmp.ne.s32.totalorder %s115, %s116
      %p125 = scmp.eq.s32.totalorder %s21, 0
      %p126 = por %p124, %p125
      %p127 = scmp.ne.s32.totalorder %s115, %s116
      %p128 = scmp.eq.s32.totalorder %s22, 1
      %p129 = por %p127, %p128
      %p131 = scmp.ne.s32.totalorder %s116, %s130
      %p132 = scmp.eq.s32.totalorder %s22, 0
      %p133 = por %p131, %p132
      %s135 = sadd.s32 %s134, 1
      %p138 = scmp.eq.s32.totalorder %s16, 1
      %p139 = scmp.ne.s32.totalorder %s134, %s136
      %p140 = scmp.eq.s32.totalorder %s16, 0
      %p141 = por %p139, %p140
      %p142 = scmp.ne.s32.totalorder %s134, %s136
      %p143 = scmp.eq.s32.totalorder %s21, 1
      %p144 = por %p142, %p143
      %p145 = scmp.ne.s32.totalorder %s136, %s137
      %p146 = scmp.eq.s32.totalorder %s21, 0
      %p147 = por %p145, %p146
      %p148 = scmp.ne.s32.totalorder %s136, %s137
      %p149 = scmp.eq.s32.totalorder %s22, 1
      %p150 = por %p148, %p149
      %p152 = scmp.ne.s32.totalorder %s137, %s151
      %p153 = scmp.eq.s32.totalorder %s22, 0
      %p154 = por %p152, %p153
      %s156 = sadd.s32 %s155, 1
      %p159 = scmp.eq.s32.totalorder %s16, 1
      %p160 = scmp.ne.s32.totalorder %s155, %s157
      %p161 = scmp.eq.s32.totalorder %s16, 0
      %p162 = por %p160, %p161
      %p163 = scmp.ne.s32.totalorder %s155, %s157
      %p164 = scmp.eq.s32.totalorder %s21, 1
      %p165 = por %p163, %p164
      %p166 = scmp.ne.s32.totalorder %s157, %s158
      %p167 = scmp.eq.s32.totalorder %s21, 0
      %p168 = por %p166, %p167
      %p169 = scmp.ne.s32.totalorder %s157, %s158
      %p170 = scmp.eq.s32.totalorder %s22, 1
      %p171 = por %p169, %p170
      %p173 = scmp.ne.s32.totalorder %s158, %s172
      %p174 = scmp.eq.s32.totalorder %s22, 0
      %p175 = por %p173, %p174
      %s176 = ssub.s32 %s16, %s23
      %p177 = scmp.eq.s32.totalorder %s176, 0
      %s179 = sadd.s32 %s178, 1
      %s180 = scalar_select %p177, %s178, %s179
      %p183 = pneg %p177
      %p184 = scmp.eq.s32.totalorder %s16, 1
      %p185 = por %p183, %p184
      %p186 = scmp.ne.s32.totalorder %s178, %s181
      %p187 = scmp.eq.s32.totalorder %s16, 0
      %p188 = por %p186, %p187
      %p189 = scmp.ne.s32.totalorder %s178, %s181
      %p190 = scmp.eq.s32.totalorder %s21, 1
      %p191 = por %p189, %p190
      %p192 = scmp.ne.s32.totalorder %s181, %s182
      %p193 = scmp.eq.s32.totalorder %s21, 0
      %p194 = por %p192, %p193
      %p195 = scmp.ne.s32.totalorder %s181, %s182
      %p196 = scmp.eq.s32.totalorder %s22, 1
      %p197 = por %p195, %p196
      %p199 = scmp.ne.s32.totalorder %s182, %s198
      %p200 = scmp.eq.s32.totalorder %s22, 0
      %p201 = por %p199, %p200
      %p202 = scmp.le.s32.totalorder 1, %s16
      %p203 = scmp.lt.s32.totalorder %s16, 3
      %p204 = pnand %p202, %p203
      %p205 = pneg %p204
      // Predicated region
      $region9: #{tpu_custom_call.1} parent=5 // pred_check
        _
      $region10: #{tpu_custom_call.1} parent=5 // pred_check_branch
        %207 = sbr.rel (%p204) target = $region12
      $region11: #{tpu_custom_call.1} parent=5 // pred_region
        %s208 = ssub.s32 %s16, 1
        // Predicated region
        $region13: #{tpu_custom_call.1} parent=11 // pred_check
          %p209 = pneg %p63
        $region14: #{tpu_custom_call.1} parent=11 // pred_check_branch
          %211 = sbr.rel (%p209) target = $region16
        $region15: #{tpu_custom_call.1} parent=11 // pred_region
          _
        $region16: #{tpu_custom_call.1} parent=11 // pred_fallthru
          _
        // Predicated region
        $region17: #{tpu_custom_call.1} parent=11 // pred_check
          %p212 = pneg %p84
        $region18: #{tpu_custom_call.1} parent=11 // pred_check_branch
          %214 = sbr.rel (%p212) target = $region20
        $region19: #{tpu_custom_call.1} parent=11 // pred_region
          _
        $region20: #{tpu_custom_call.1} parent=11 // pred_fallthru
          _
        // Predicated region
        $region21: #{tpu_custom_call.1} parent=11 // pred_check
          %p215 = pneg %p105
        $region22: #{tpu_custom_call.1} parent=11 // pred_check_branch
          %217 = sbr.rel (%p215) target = $region24
        $region23: #{tpu_custom_call.1} parent=11 // pred_region
          _
        $region24: #{tpu_custom_call.1} parent=11 // pred_fallthru
          _
        // Predicated region
        $region25: #{tpu_custom_call.1} parent=11 // pred_check
          %p218 = pneg %p126
        $region26: #{tpu_custom_call.1} parent=11 // pred_check_branch
          %220 = sbr.rel (%p218) target = $region28
        $region27: #{tpu_custom_call.1} parent=11 // pred_region
          _
        $region28: #{tpu_custom_call.1} parent=11 // pred_fallthru
          _
        // Predicated region
        $region29: #{tpu_custom_call.1} parent=11 // pred_check
          %p221 = pneg %p147
        $region30: #{tpu_custom_call.1} parent=11 // pred_check_branch
          %223 = sbr.rel (%p221) target = $region32
        $region31: #{tpu_custom_call.1} parent=11 // pred_region
          _
        $region32: #{tpu_custom_call.1} parent=11 // pred_fallthru
          _
        // Predicated region
        $region33: #{tpu_custom_call.1} parent=11 // pred_check
          %p224 = pneg %p168
        $region34: #{tpu_custom_call.1} parent=11 // pred_check_branch
          %226 = sbr.rel (%p224) target = $region36
        $region35: #{tpu_custom_call.1} parent=11 // pred_region
          _
        $region36: #{tpu_custom_call.1} parent=11 // pred_fallthru
          _
      $region12: #{tpu_custom_call.1} parent=5 // pred_fallthru
        _
      %p227 = scmp.lt.s32.totalorder %s16, 2
      // Predicated region
      $region37: #{tpu_custom_call.1} parent=5 // pred_check
        %p228 = pneg %p227
      $region38: #{tpu_custom_call.1} parent=5 // pred_check_branch
        %230 = sbr.rel (%p228) target = $region40
      $region39: #{tpu_custom_call.1} parent=5 // pred_region
        // Predicated region
        $region41: #{tpu_custom_call.1} parent=39 // pred_check
          %p231 = pneg %p36
        $region42: #{tpu_custom_call.1} parent=39 // pred_check_branch
          %233 = sbr.rel (%p231) target = $region44
        $region43: #{tpu_custom_call.1} parent=39 // pred_region
          %p234 = scmp.lt.s32.totalorder %s16, 1
          %s235 = scalar_select %p234, %s16, 1
          %s236 = smul.addr %s235, 8
          %s237 = scalar_lea.vmem %s0, %s236
        $region44: #{tpu_custom_call.1} parent=39 // pred_fallthru
          _
      $region40: #{tpu_custom_call.1} parent=5 // pred_fallthru
        _
      %p238 = scmp.le.s32.totalorder 1, %s16
      %p239 = scmp.lt.s32.totalorder %s16, 3
      %p240 = pnand %p238, %p239
      %p241 = pneg %p240
      // Predicated region
      $region45: #{tpu_custom_call.1} parent=5 // pred_check
        _
      $region46: #{tpu_custom_call.1} parent=5 // pred_check_branch
        %243 = sbr.rel (%p240) target = $region48
      $region47: #{tpu_custom_call.1} parent=5 // pred_region
        %s244 = ssub.s32 %s16, 1
        %p245 = scmp.lt.s32.totalorder %s21, 1
        %s246 = scalar_select %p245, %s21, 1
        %s247 = smul.addr %s246, 8
        %s248 = scalar_lea.vmem %s0, %s247
        %p249 = pneg %p42
        %p250 = pneg %p39
        %p251 = pneg %p63
        %p252 = pneg %p60
        %p253 = pneg %p84
        %p254 = pneg %p81
        %p255 = pneg %p105
        %p256 = pneg %p102
        %p257 = pneg %p126
        %p258 = pneg %p123
        %p259 = pneg %p147
        %p260 = pneg %p144
        %p261 = pneg %p168
        %p262 = pneg %p165
        %p263 = pneg %p194
        %p264 = pneg %p191
        %s265 = sand.u32 %s181, 1
        %s266 = scalar_lea.sflag [#allocation3], %s265
        %s267 = sand.u32 %s181, 1
        %s268 = smul.addr %s267, 8
        %s269 = scalar_lea.vmem [#allocation2], %s268
        %p270 = scmp.lt.s32.totalorder %s21, 1
        %s271 = scalar_select %p270, %s21, 1
        %s272 = smul.addr %s271, 8
        %s273 = scalar_lea.vmem %s0, %s272
        %v274 = vld [vmem:[%s273] sm:$0xff]
        %vm275 = vcmask 261120
        %v276 = vsel %vm275, %v274, 0.0
        %277 = vadd.xlane.f32.xlu0 %v276
        %v278 = vpop.xlane.xlu0 %277
        %v279 = vmul.f32 %v274, %v274
        %v280 = vsel %vm275, %v279, 0.0
        %281 = vadd.xlane.f32.xlu0 %v280
        %v282 = vpop.xlane.xlu0 %281
        %v283 = vmul.f32 %v278, 0.03125
        %v284 = vmul.f32 %v282, 0.03125
        %v285 = vmul.f32 %v283, %v283
        %v286 = vsub.f32 %v284, %v285
        %v287 = vmax.f32 %v286, 0.0
        %v288 = vsub.f32 %v274, %v283
        %v289 = vadd.f32 %v287, 1e-05
        %v290 = vrsqrt.pop %v289
        %v291 = vmul.f32 %v290, %v289
        %v292 = vmul.f32 %v291, %v290
        %v293 = vmul.f32 0.5, %v292
        %v294 = vsub.f32 1.5, %v293
        %v295 = vmul.f32 %v290, %v294
        %vm296 = vweird.f32 %v289
        %vm297 = vweird.f32 %v290
        %vm298 = vmor %vm296, %vm297
        %v299 = vsel %vm298, %v290, %v295
        %v300 = vmul.f32 %v288, %v299
        %v301 = vld [vmem:[%s1] sm:$0xff]
        %v302 = vld [vmem:[%s1 + $0x8] sm:$0xff]
        %v303 = vld [vmem:[%s1 + $0x10] sm:$0xff]
        %v304 = vld [vmem:[%s1 + $0x18] sm:$0xff]
        %v305 = vld [vmem:[%s2] sm:$0x1]
        %v307 = vperm.slane %v305, 0
        %v310 = vsel %vm275, %v300, 0
        %312 = vmatpush.msra.mxu0 0.0
        %313 = vmatpush.msra.mxu0 0.0
        %314 = vmatpush.msra.mxu0 0.0
        %315 = vmatpush.msra.mxu0 0.0
        %316 = vmatpush.msra.mxu0 0.0
        %317 = vmatpush.msra.mxu0 0.0
        %318 = vmatpush.msra.mxu0 0.0
        %319 = vmatpush.msra.mxu0 0.0
        %320 = vmatpush.msra.mxu0 0.0
        %321 = vmatpush.msra.mxu0 0.0
        %322 = vmatpush.msra.mxu0 0.0
        %323 = vmatpush.msra.mxu0 0.0
        %324 = vmatpush.msra.mxu0 %v304
        %325 = vmatpush.msra.mxu0 %v303
        %326 = vmatpush.msra.mxu0 %v302
        %327 = vmatpush.msra.mxu0 %v301
        %328 = vmatmul.f32.gmra.mxu0 %v310
        %v329 = vpop.f32.mrf.mxu0
        %v330 = vadd.f32 %v307, %v329
        %331 = vdwg.mxu0
        %v332 = vmul.f32 %v330, 0.01
        %v333 = vmax.f32 %v330, %v332
        %vm334 = vcmask 523264
        %v335 = vsel %vm334, %v333, 0.0
        %336 = vadd.xlane.f32.xlu0 %v335
        %v337 = vpop.xlane.xlu0 %336
        %v338 = vmul.f32 %v333, %v333
        %v339 = vsel %vm334, %v338, 0.0
        %340 = vadd.xlane.f32.xlu0 %v339
        %v341 = vpop.xlane.xlu0 %340
        %v342 = vmul.f32 %v337, 0.015625
        %v343 = vmul.f32 %v341, 0.015625
        %v344 = vmul.f32 %v342, %v342
        %v345 = vsub.f32 %v343, %v344
        %v346 = vmax.f32 %v345, 0.0
        %v347 = vsub.f32 %v333, %v342
        %v348 = vadd.f32 %v346, 1e-05
        %v349 = vrsqrt.pop %v348
        %v350 = vmul.f32 %v349, %v348
        %v351 = vmul.f32 %v350, %v349
        %v352 = vmul.f32 0.5, %v351
        %v353 = vsub.f32 1.5, %v352
        %v354 = vmul.f32 %v349, %v353
        %vm355 = vweird.f32 %v348
        %vm356 = vweird.f32 %v349
        %vm357 = vmor %vm355, %vm356
        %v358 = vsel %vm357, %v349, %v354
        %v359 = vmul.f32 %v347, %v358
        %v360 = vld [vmem:[%s3] sm:$0xff]
        %v361 = vld [vmem:[%s3 + $0x8] sm:$0xff]
        %v362 = vld [vmem:[%s3 + $0x10] sm:$0xff]
        %v363 = vld [vmem:[%s3 + $0x18] sm:$0xff]
        %v364 = vld [vmem:[%s3 + $0x20] sm:$0xff]
        %v365 = vld [vmem:[%s3 + $0x28] sm:$0xff]
        %v366 = vld [vmem:[%s3 + $0x30] sm:$0xff]
        %v367 = vld [vmem:[%s3 + $0x38] sm:$0xff]
        %v368 = vld [vmem:[%s4] sm:$0x1]
        %v370 = vperm.slane %v368, 0
        %v373 = vsel %vm334, %v359, 0
        %375 = vmatpush.msra.mxu0 0.0
        %376 = vmatpush.msra.mxu0 0.0
        %377 = vmatpush.msra.mxu0 0.0
        %378 = vmatpush.msra.mxu0 0.0
        %379 = vmatpush.msra.mxu0 0.0
        %380 = vmatpush.msra.mxu0 0.0
        %381 = vmatpush.msra.mxu0 0.0
        %382 = vmatpush.msra.mxu0 0.0
        %383 = vmatpush.msra.mxu0 %v367
        %384 = vmatpush.msra.mxu0 %v366
        %385 = vmatpush.msra.mxu0 %v365
        %386 = vmatpush.msra.mxu0 %v364
        %387 = vmatpush.msra.mxu0 %v363
        %388 = vmatpush.msra.mxu0 %v362
        %389 = vmatpush.msra.mxu0 %v361
        %390 = vmatpush.msra.mxu0 %v360
        %391 = vmatmul.f32.gmra.mxu0 %v373
        %v392 = vpop.f32.mrf.mxu0
        %v393 = vadd.f32 %v370, %v392
        %394 = vdwg.mxu0
        %v395 = vmul.f32 %v393, 0.01
        %v396 = vmax.f32 %v393, %v395
        %vm397 = vcmask 392192
        %v398 = vsel %vm397, %v396, 0.0
        %399 = vadd.xlane.f32.xlu0 %v398
        %v400 = vpop.xlane.xlu0 %399
        %v401 = vmul.f32 %v396, %v396
        %v402 = vsel %vm397, %v401, 0.0
        %403 = vadd.xlane.f32.xlu0 %v402
        %v404 = vpop.xlane.xlu0 %403
        %v405 = vmul.f32 %v400, 0.020833334
        %v406 = vmul.f32 %v404, 0.020833334
        %v407 = vmul.f32 %v405, %v405
        %v408 = vsub.f32 %v406, %v407
        %v409 = vmax.f32 %v408, 0.0
        %v410 = vsub.f32 %v396, %v405
        %v411 = vadd.f32 %v409, 1e-05
        %v412 = vrsqrt.pop %v411
        %v413 = vmul.f32 %v412, %v411
        %v414 = vmul.f32 %v413, %v412
        %v415 = vmul.f32 0.5, %v414
        %v416 = vsub.f32 1.5, %v415
        %v417 = vmul.f32 %v412, %v416
        %vm418 = vweird.f32 %v411
        %vm419 = vweird.f32 %v412
        %vm420 = vmor %vm418, %vm419
        %v421 = vsel %vm420, %v412, %v417
        %v422 = vmul.f32 %v410, %v421
        %v423 = vld [vmem:[%s5] sm:$0xff]
        %v424 = vld [vmem:[%s5 + $0x8] sm:$0xff]
        %v425 = vld [vmem:[%s5 + $0x10] sm:$0xff]
        %v426 = vld [vmem:[%s5 + $0x18] sm:$0xff]
        %v427 = vld [vmem:[%s5 + $0x20] sm:$0xff]
        %v428 = vld [vmem:[%s5 + $0x28] sm:$0xff]
        %v429 = vld [vmem:[%s6] sm:$0x1]
        %v431 = vperm.slane %v429, 0
        %v434 = vsel %vm397, %v422, 0
        %436 = vmatpush.msra.mxu0 0.0
        %437 = vmatpush.msra.mxu0 0.0
        %438 = vmatpush.msra.mxu0 0.0
        %439 = vmatpush.msra.mxu0 0.0
        %440 = vmatpush.msra.mxu0 0.0
        %441 = vmatpush.msra.mxu0 0.0
        %442 = vmatpush.msra.mxu0 0.0
        %443 = vmatpush.msra.mxu0 0.0
        %444 = vmatpush.msra.mxu0 0.0
        %445 = vmatpush.msra.mxu0 0.0
        %446 = vmatpush.msra.mxu0 %v428
        %447 = vmatpush.msra.mxu0 %v427
        %448 = vmatpush.msra.mxu0 %v426
        %449 = vmatpush.msra.mxu0 %v425
        %450 = vmatpush.msra.mxu0 %v424
        %451 = vmatpush.msra.mxu0 %v423
        %452 = vmatmul.f32.gmra.mxu0 %v434
        %v453 = vpop.f32.mrf.mxu0
        %v454 = vadd.f32 %v431, %v453
        %455 = vdwg.mxu0
        %vm456 = vcmask 171008
        %457 = vst.msk [vmem:[%s269] sm:$0xff] %vm456, %v454
        %s458 = sand.u32 %s181, 1
        %s459 = scalar_lea.sflag [#allocation3], %s458
        %s460 = sand.u32 %s181, 1
        %s461 = smul.addr %s460, 8
        %s462 = scalar_lea.vmem [#allocation2], %s461
        // Predicated region
        $region49: #{tpu_custom_call.1} parent=47 // pred_check
          %p463 = pneg %p191
        $region50: #{tpu_custom_call.1} parent=47 // pred_check_branch
          %465 = sbr.rel (%p463) target = $region52
        $region51: #{tpu_custom_call.1} parent=47 // pred_region
          %467 = vsyncadd %s459, 0
          %s468 = smul.addr %s21, 8
          %s469 = scalar_lea.hbm %s7, %s468
          %s471 = sshll.u32 %s462, 4
          %s472 = int_to_ptr.vmem [resolvable:$true] %s471
          %s473 = sshll.u32 %s469, 4
          %s474 = int_to_ptr.hbm [resolvable:$true] %s473
          %476 = dma.vmem_to_hbm [thread:$0]  %s472, 128, %s474, %s459
        $region52: #{tpu_custom_call.1} parent=47 // pred_fallthru
          _
      $region48: #{tpu_custom_call.1} parent=5 // pred_fallthru
        _
      %p477 = scmp.le.s32.totalorder 2, %s16
      // Predicated region
      $region53: #{tpu_custom_call.1} parent=5 // pred_check
        %p478 = pneg %p477
      $region54: #{tpu_custom_call.1} parent=5 // pred_check_branch
        %480 = sbr.rel (%p478) target = $region56
      $region55: #{tpu_custom_call.1} parent=5 // pred_region
        %s481 = ssub.s32 %s16, 2
        // Predicated region
        $region57: #{tpu_custom_call.1} parent=55 // pred_check
          %p482 = pneg %p197
        $region58: #{tpu_custom_call.1} parent=55 // pred_check_branch
          %484 = sbr.rel (%p482) target = $region60
        $region59: #{tpu_custom_call.1} parent=55 // pred_region
          %s485 = sand.u32 %s182, 1
          %s486 = scalar_lea.sflag [#allocation3], %s485
          %s487 = sand.u32 %s182, 1
          %s488 = smul.addr %s487, 8
          %s489 = scalar_lea.vmem [#allocation2], %s488
          %491 = dma.done %s486, 128
        $region60: #{tpu_custom_call.1} parent=55 // pred_fallthru
          _
      $region56: #{tpu_custom_call.1} parent=5 // pred_fallthru
        _
    $region6: #{tpu_custom_call.1} parent=1 // loop_footer
      %s20 = sadd.s32 1, %s16
    $region7: #{tpu_custom_call.1} parent=1 // loop_footer_branch
      %15 = sbr.rel target = $region3
    $region8: #{tpu_custom_call.1} parent=1 // loop_exit
      _
    %492 = vsyncpa [#allocation3], 1
    %s493 = scalar_lea.sflag [#allocation3], 1
    %494 = vsyncpa %s493, 1

</llo_original>
